<compile_context>
chip_gen: v6e
topology: v6e:2x2x1
jax: 0.10.0
libtpu: 0.0.40
codegen_flags: <defaults>
</compile_context>

<pallas_src>
import functools

import jax
import jax.numpy as jnp
from jax.experimental import pallas as pl
from jax.experimental.pallas import tpu as pltpu


def _round_up(x, m):
    return ((x + m - 1) // m) * m


def _gate_offsets(time_dim):
    """Row offsets (8-aligned) inside the packed gate-parameter slab."""
    r_t2v = 0                                   # rows 0..1: t2v weights / biases
    r_w1 = 8                                    # fused TimeReLU stage-1 weights
    r_b1 = r_w1 + _round_up(time_dim, 8)        # fused stage-1 bias row
    r_w2 = r_b1 + 8                             # block-diagonal stage-2 weights (64 rows)
    r_b2 = r_w2 + 64                            # stage-2 bias row
    rows = r_b2 + 8
    return r_t2v, r_w1, r_b1, r_w2, r_b2, rows


# ----------------------------------------------------------------------------
# Kernel: full forward pass for one batch tile.  All parameter slabs are small
# and VMEM-resident across the grid (constant index_maps).
# ----------------------------------------------------------------------------
def prediction_kernel(
    x_ref,                       # (TB, d_in)      raw features
    t_ref,                       # (TB, 1)         times
    w0_ref,                      # (d_in+2, H)     [w0x rows | w0t row | b0 row]
    w1_ref,                      # (H+1, H)        [w1 | b1 row]
    w2_ref,                      # (H+1, OUT)      [w2 | b2 row]
    gate_ref,                    # (GR, GW)        packed t2v + fused TimeReLU params
    out_ref,                     # (TB, OUT)
    *, hidden, d_in, time_dim, t2v_linear,
):
    r_t2v, r_w1, r_b1, r_w2, r_b2, _ = _gate_offsets(time_dim)

    x = x_ref[...]                                           # (TB, d_in)
    t = t_ref[...]                                           # (TB, 1)

    # ---- Time2Vec (in_features == 1 -> broadcast multiply), no concatenate ----
    t2v_w = gate_ref[r_t2v:r_t2v + 1, :time_dim]             # (1, time_dim)
    t2v_b = gate_ref[r_t2v + 1:r_t2v + 2, :time_dim]         # (1, time_dim)
    v = t * t2v_w + t2v_b                                    # (TB, time_dim)
    lane = jax.lax.broadcasted_iota(jnp.int32, v.shape, 1)
    te = jnp.where(lane < t2v_linear, v, jnp.sin(v))         # linear | sin lanes

    # ---- Fused TimeReLU gate parameters (functions of te only) ----
    tr_w1 = gate_ref[r_w1:r_w1 + time_dim, :64]              # (time_dim, 64)
    tr_b1 = gate_ref[r_b1:r_b1 + 1, :64]                     # (1, 64)
    tr_w2 = gate_ref[r_w2:r_w2 + 64, :4 * hidden]            # (64, 4H) block-diag
    tr_b2 = gate_ref[r_b2:r_b2 + 1, :4 * hidden]             # (1, 4H)
    g1 = jnp.dot(te, tr_w1, preferred_element_type=jnp.float32) + tr_b1
    g2 = jnp.dot(g1, tr_w2, preferred_element_type=jnp.float32) + tr_b2
    thr0 = g2[:, 0 * hidden:1 * hidden]
    alp0 = g2[:, 1 * hidden:2 * hidden]
    thr1 = g2[:, 2 * hidden:3 * hidden]
    alp1 = g2[:, 3 * hidden:4 * hidden]

    # ---- layer_0 (== cat([x, t]) @ W0 + b0) + TimeReLU 0 ----
    w0x = w0_ref[0:d_in, :]
    w0t = w0_ref[d_in:d_in + 1, :]
    b0 = w0_ref[d_in + 1:d_in + 2, :]
    h = jnp.dot(x, w0x, preferred_element_type=jnp.float32) + t * w0t + b0
    h = jnp.where(h > thr0, h, alp0 * (h - thr0) + thr0)

    # ---- layer_1 + TimeReLU 1 ----
    h = (jnp.dot(h, w1_ref[0:hidden, :], preferred_element_type=jnp.float32)
         + w1_ref[hidden:hidden + 1, :])
    h = jnp.where(h > thr1, h, alp1 * (h - thr1) + thr1)

    # ---- layer_2 + exact sigmoid (tanh form: single EUP push) ----
    logits = (jnp.dot(h, w2_ref[0:hidden, :], preferred_element_type=jnp.float32)
              + w2_ref[hidden:hidden + 1, :])
    out_ref[...] = 0.5 * jnp.tanh(0.5 * logits) + 0.5


# ----------------------------------------------------------------------------
# Parameter construction (mirrors the PyTorch __init__ shapes / inits).
# Linear weights are stored pre-transposed as (in_features, out_features).
# ----------------------------------------------------------------------------
def _uniform_linear(key, fan_in, fan_out):
    kw, kb = jax.random.split(key)
    bound = 1.0 / jnp.sqrt(float(fan_in))
    w = jax.random.uniform(kw, (fan_in, fan_out), jnp.float32, -bound, bound)
    b = jax.random.uniform(kb, (1, fan_out), jnp.float32, -bound, bound)
    return w, b


def _kaiming_linear(key, fan_in, fan_out):
    w = jax.random.normal(key, (fan_in, fan_out), jnp.float32) * jnp.sqrt(2.0 / fan_in)
    b = jnp.zeros((1, fan_out), jnp.float32)
    return w, b


def make_params(key, data_shape, hidden_shape, out_shape, time_dim=16):
    ks = jax.random.split(key, 16)
    p = {}
    # Time2Vec(1, 16): linear_shape = 4, sine_shape = 12
    p["t2v_lw"], p["t2v_lb"] = _uniform_linear(ks[0], 1, time_dim // 4)
    p["t2v_sw"], p["t2v_sb"] = _uniform_linear(ks[1], 1, time_dim - time_dim // 4)
    # main layers (kaiming weights, zero bias)
    p["w0"], p["b0"] = _kaiming_linear(ks[2], data_shape, hidden_shape)
    p["w1"], p["b1"] = _kaiming_linear(ks[3], hidden_shape, hidden_shape)
    p["w2"], p["b2"] = _kaiming_linear(ks[4], hidden_shape, out_shape)
    # relu_0 / relu_1: TimeReLU(hidden, time_dim, leaky=True)
    for i, (k_t0, k_t1, k_a0, k_a1) in enumerate(
        [(ks[5], ks[6], ks[7], ks[8]), (ks[9], ks[10], ks[11], ks[12])]
    ):
        p[f"r{i}_t0w"], p[f"r{i}_t0b"] = _uniform_linear(k_t0, time_dim, 16)
        p[f"r{i}_t1w"], p[f"r{i}_t1b"] = _uniform_linear(k_t1, 16, hidden_shape)
        p[f"r{i}_a0w"], p[f"r{i}_a0b"] = _uniform_linear(k_a0, time_dim, 16)
        p[f"r{i}_a1w"], p[f"r{i}_a1b"] = _uniform_linear(k_a1, 16, hidden_shape)
    return p


def pack_params(p, hidden, time_dim):
    """Pack the 26 per-layer tensors into 4 kernel slabs."""
    # Main layers: bias folded as the final row of each (pre-transposed) weight slab.
    w0_slab = jnp.concatenate([p["w0"], p["b0"]], axis=0)      # (d_in+2, H)
    w1_slab = jnp.concatenate([p["w1"], p["b1"]], axis=0)      # (H+1, H)
    w2_slab = jnp.concatenate([p["w2"], p["b2"]], axis=0)      # (H+1, OUT)

    r_t2v, r_w1, r_b1, r_w2, r_b2, rows = _gate_offsets(time_dim)
    gw = _round_up(max(4 * hidden, 64, time_dim), 128)
    gate = jnp.zeros((rows, gw), jnp.float32)

    # Time2Vec: row0 = [lw | sw], row1 = [lb | sb]
    t2v_w = jnp.concatenate([p["t2v_lw"], p["t2v_sw"]], axis=1)   # (1, time_dim)
    t2v_b = jnp.concatenate([p["t2v_lb"], p["t2v_sb"]], axis=1)   # (1, time_dim)
    gate = gate.at[r_t2v, :time_dim].set(t2v_w[0])
    gate = gate.at[r_t2v + 1, :time_dim].set(t2v_b[0])

    # TimeReLU stage-1 fused: te(time_dim) -> [thr0_h | alp0_h | thr1_h | alp1_h]
    tr_w1 = jnp.concatenate(
        [p["r0_t0w"], p["r0_a0w"], p["r1_t0w"], p["r1_a0w"]], axis=1)   # (time_dim, 64)
    tr_b1 = jnp.concatenate(
        [p["r0_t0b"], p["r0_a0b"], p["r1_t0b"], p["r1_a0b"]], axis=1)   # (1, 64)
    gate = gate.at[r_w1:r_w1 + time_dim, :64].set(tr_w1)
    gate = gate.at[r_b1, :64].set(tr_b1[0])

    # TimeReLU stage-2 fused: block-diagonal (64, 4H) -> [thr0 | alp0 | thr1 | alp1]
    z = jnp.zeros((16, hidden), jnp.float32)
    tr_w2 = jnp.concatenate(
        [jnp.concatenate([p["r0_t1w"], z, z, z], axis=1),
         jnp.concatenate([z, p["r0_a1w"], z, z], axis=1),
         jnp.concatenate([z, z, p["r1_t1w"], z], axis=1),
         jnp.concatenate([z, z, z, p["r1_a1w"]], axis=1)], axis=0)      # (64, 4H)
    tr_b2 = jnp.concatenate(
        [p["r0_t1b"], p["r0_a1b"], p["r1_t1b"], p["r1_a1b"]], axis=1)   # (1, 4H)
    gate = gate.at[r_w2:r_w2 + 64, :4 * hidden].set(tr_w2)
    gate = gate.at[r_b2, :4 * hidden].set(tr_b2[0])

    return w0_slab, w1_slab, w2_slab, gate


# ----------------------------------------------------------------------------
# Wrapper: batch-gridded pallas_call, no host-side concat/pad of the input.
# ----------------------------------------------------------------------------
@functools.partial(jax.jit, static_argnames=("out_shape",))
def prediction_model_forward(x, times, params, out_shape):
    x = x.astype(jnp.float32)
    times = times.astype(jnp.float32)
    batch, d_in = x.shape
    hidden = params["w1"].shape[0]
    time_dim = params["r0_t0w"].shape[0]

    w0s, w1s, w2s, gate = pack_params(params, hidden, time_dim)

    # Batch tile: large (amortizes ~0.35us per-step overhead) but capped at 2048
    # so the f32 intermediates + double-buffered x/out fit the 32 MiB scoped
    # budget on every generation (incl. v7x's 64 MiB physical VMEM).  Halve the
    # tile when needed so the grid has >= 2 steps (v7x megacore balance).
    tb = min(2048, _round_up(max(batch, 1), 8))
    while tb >= 512 and pl.cdiv(batch, tb) < 2:
        tb = _round_up(tb // 2, 8)
    grid = (pl.cdiv(batch, tb),)

    kernel = functools.partial(prediction_kernel, hidden=hidden, d_in=d_in,
                               time_dim=time_dim, t2v_linear=time_dim // 4)

    return pl.pallas_call(
        kernel,
        out_shape=jax.ShapeDtypeStruct((batch, out_shape), jnp.float32),
        grid=grid,
        in_specs=[
            pl.BlockSpec((tb, d_in), lambda i: (i, 0)),       # X tile
            pl.BlockSpec((tb, 1), lambda i: (i, 0)),          # times tile
            pl.BlockSpec(w0s.shape, lambda i: (0, 0)),        # params: constant
            pl.BlockSpec(w1s.shape, lambda i: (0, 0)),        #   index_map ->
            pl.BlockSpec(w2s.shape, lambda i: (0, 0)),        #   VMEM-resident
            pl.BlockSpec(gate.shape, lambda i: (0, 0)),
        ],
        out_specs=pl.BlockSpec((tb, out_shape), lambda i: (i, 0)),
        compiler_params=pltpu.CompilerParams(
            dimension_semantics=("parallel",),
            vmem_limit_bytes=32 * 1024 * 1024,
        ),
    )(x, times, w0s, w1s, w2s, gate)


# ----------------------------------------------------------------------------
# Pure-JAX reference (verification only, full f32 matmul precision).
# ----------------------------------------------------------------------------
def reference_forward(x, times, p):
    dot = functools.partial(jnp.dot, precision=jax.lax.Precision.HIGHEST)
    x_cat = jnp.concatenate([x, times], axis=1)
    te = jnp.concatenate(
        [dot(times, p["t2v_lw"]) + p["t2v_lb"],
         jnp.sin(dot(times, p["t2v_sw"]) + p["t2v_sb"])],
        axis=1)

    def time_relu(h, i):
        thr = dot(dot(te, p[f"r{i}_t0w"]) + p[f"r{i}_t0b"], p[f"r{i}_t1w"]) + p[f"r{i}_t1b"]
        alp = dot(dot(te, p[f"r{i}_a0w"]) + p[f"r{i}_a0b"], p[f"r{i}_a1w"]) + p[f"r{i}_a1b"]
        return jnp.where(h > thr, h, alp * (h - thr) + thr)

    h = time_relu(dot(x_cat, p["w0"]) + p["b0"], 0)
    h = time_relu(dot(h, p["w1"]) + p["b1"], 1)
    return jax.nn.sigmoid(dot(h, p["w2"]) + p["b2"])


if __name__ == "__main__":
    # PredictionModel(data_shape=5, hidden_shape=32, out_shape=4, time2vec=True)
    # Forward does cat([X, times]) before layer_0, so raw X has data_shape-1 feats.
    DATA_SHAPE, HIDDEN, OUT, BATCH = 5, 32, 4, 8

    key = jax.random.PRNGKey(0)
    k_x, k_t, k_p = jax.random.split(key, 3)
    x = jax.random.normal(k_x, (BATCH, DATA_SHAPE - 1), jnp.float32)
    times = jax.random.uniform(k_t, (BATCH, 1), jnp.float32)
    params = make_params(k_p, DATA_SHAPE, HIDDEN, OUT)

    out = prediction_model_forward(x, times, params, OUT)
    out = jax.block_until_ready(out)

    ref = reference_forward(x, times, params)
    assert out.shape == (BATCH, OUT)
    # Tolerance covers MXU pass-precision differences vs the HIGHEST-precision
    # XLA reference (the sigmoid itself is now exact).
    assert jnp.allclose(out, ref, atol=2e-3, rtol=2e-3), (
        f"max abs diff {jnp.max(jnp.abs(out - ref))}")
    print("KERNEL_OK")
</pallas_src>

<mosaic_0001>
module attributes {stable_mosaic.version = 11 : i64} {
  func.func @prediction_kernel(%arg0: i32, %arg1: memref<8x4xf32, #tpu.memory_space<vmem>>, %arg2: memref<8x1xf32, #tpu.memory_space<vmem>>, %arg3: memref<6x32xf32, #tpu.memory_space<vmem>>, %arg4: memref<33x32xf32, #tpu.memory_space<vmem>>, %arg5: memref<33x4xf32, #tpu.memory_space<vmem>>, %arg6: memref<104x128xf32, #tpu.memory_space<vmem>>, %arg7: memref<8x4xf32, #tpu.memory_space<vmem>>) attributes {dimension_semantics = [#tpu.dimension_semantics<parallel>], iteration_bounds = array<i64: 1>, scalar_prefetch = 0 : i64, scratch_operands = 0 : i64, tpu.core_type = #tpu.core_type<tc>, window_params = [{transform_indices = @transform_0, window_bounds = array<i64: 8, 4>}, {transform_indices = @transform_1, window_bounds = array<i64: 8, 1>}, {pipeline_mode = #tpu.pipeline_mode<synchronous>, transform_indices = @transform_2, window_bounds = array<i64: 6, 32>}, {pipeline_mode = #tpu.pipeline_mode<synchronous>, transform_indices = @transform_3, window_bounds = array<i64: 33, 32>}, {pipeline_mode = #tpu.pipeline_mode<synchronous>, transform_indices = @transform_4, window_bounds = array<i64: 33, 4>}, {pipeline_mode = #tpu.pipeline_mode<synchronous>, transform_indices = @transform_5, window_bounds = array<i64: 104, 128>}, {transform_indices = @transform_6, window_bounds = array<i64: 8, 4>}]} {
    %c0 = arith.constant 0 : index
    %c0_0 = arith.constant 0 : index
    %0 = vector.load %arg1[%c0, %c0_0] : memref<8x4xf32, #tpu.memory_space<vmem>>, vector<8x4xf32>
    %c0_1 = arith.constant 0 : index
    %c0_2 = arith.constant 0 : index
    %1 = vector.load %arg2[%c0_1, %c0_2] : memref<8x1xf32, #tpu.memory_space<vmem>>, vector<8x1xf32>
    %c0_3 = arith.constant 0 : index
    %c0_4 = arith.constant 0 : index
    %2 = vector.load %arg6[%c0_3, %c0_4] : memref<104x128xf32, #tpu.memory_space<vmem>>, vector<1x16xf32>
    %c1 = arith.constant 1 : index
    %c0_5 = arith.constant 0 : index
    %3 = vector.load %arg6[%c1, %c0_5] : memref<104x128xf32, #tpu.memory_space<vmem>>, vector<1x16xf32>
    %4 = vector.broadcast %1 : vector<8x1xf32> to vector<8x16xf32>
    %5 = vector.broadcast %2 : vector<1x16xf32> to vector<8x16xf32>
    %6 = arith.mulf %4, %5 : vector<8x16xf32>
    %7 = vector.broadcast %3 : vector<1x16xf32> to vector<8x16xf32>
    %8 = arith.addf %6, %7 : vector<8x16xf32>
    %9 = tpu.iota {dimensions = array<i32: 1>} : vector<8x16xi32>
    %c4_i32 = arith.constant 4 : i32
    %10 = vector.broadcast %c4_i32 : i32 to vector<8x16xi32>
    %11 = arith.cmpi slt, %9, %10 : vector<8x16xi32>
    %12 = math.sin %8 : vector<8x16xf32>
    %13 = arith.select %11, %8, %12 : vector<8x16xi1>, vector<8x16xf32>
    %c8 = arith.constant 8 : index
    %c0_6 = arith.constant 0 : index
    %14 = vector.load %arg6[%c8, %c0_6] : memref<104x128xf32, #tpu.memory_space<vmem>>, vector<16x64xf32>
    %c24 = arith.constant 24 : index
    %c0_7 = arith.constant 0 : index
    %15 = vector.load %arg6[%c24, %c0_7] : memref<104x128xf32, #tpu.memory_space<vmem>>, vector<1x64xf32>
    %c32 = arith.constant 32 : index
    %c0_8 = arith.constant 0 : index
    %16 = vector.load %arg6[%c32, %c0_8] : memref<104x128xf32, #tpu.memory_space<vmem>>, vector<64x128xf32>
    %c96 = arith.constant 96 : index
    %c0_9 = arith.constant 0 : index
    %17 = vector.load %arg6[%c96, %c0_9] : memref<104x128xf32, #tpu.memory_space<vmem>>, vector<1x128xf32>
    %cst = arith.constant dense<0.000000e+00> : vector<8x64xf32>
    %18 = tpu.matmul %13, %14, %cst {dimension_numbers = #tpu.dot_dimension_numbers<[1], [0], [0], [1], [0, 0, 1, 1], [], []>} : vector<8x16xf32>, vector<16x64xf32>, vector<8x64xf32> -> vector<8x64xf32>
    %19 = vector.broadcast %15 : vector<1x64xf32> to vector<8x64xf32>
    %20 = arith.addf %18, %19 : vector<8x64xf32>
    %cst_10 = arith.constant dense<0.000000e+00> : vector<8x128xf32>
    %21 = tpu.matmul %20, %16, %cst_10 {dimension_numbers = #tpu.dot_dimension_numbers<[1], [0], [0], [1], [0, 0, 1, 1], [], []>} : vector<8x64xf32>, vector<64x128xf32>, vector<8x128xf32> -> vector<8x128xf32>
    %22 = vector.broadcast %17 : vector<1x128xf32> to vector<8x128xf32>
    %23 = arith.addf %21, %22 : vector<8x128xf32>
    %24 = vector.extract_strided_slice %23 {offsets = [0, 0], sizes = [8, 32], strides = [1, 1]} : vector<8x128xf32> to vector<8x32xf32>
    %25 = vector.extract_strided_slice %23 {offsets = [0, 32], sizes = [8, 32], strides = [1, 1]} : vector<8x128xf32> to vector<8x32xf32>
    %26 = vector.extract_strided_slice %23 {offsets = [0, 64], sizes = [8, 32], strides = [1, 1]} : vector<8x128xf32> to vector<8x32xf32>
    %27 = vector.extract_strided_slice %23 {offsets = [0, 96], sizes = [8, 32], strides = [1, 1]} : vector<8x128xf32> to vector<8x32xf32>
    %c0_11 = arith.constant 0 : index
    %c0_12 = arith.constant 0 : index
    %28 = vector.load %arg3[%c0_11, %c0_12] : memref<6x32xf32, #tpu.memory_space<vmem>>, vector<4x32xf32>
    %c4 = arith.constant 4 : index
    %c0_13 = arith.constant 0 : index
    %29 = vector.load %arg3[%c4, %c0_13] : memref<6x32xf32, #tpu.memory_space<vmem>>, vector<1x32xf32>
    %c5 = arith.constant 5 : index
    %c0_14 = arith.constant 0 : index
    %30 = vector.load %arg3[%c5, %c0_14] : memref<6x32xf32, #tpu.memory_space<vmem>>, vector<1x32xf32>
    %cst_15 = arith.constant dense<0.000000e+00> : vector<8x32xf32>
    %31 = tpu.matmul %0, %28, %cst_15 {dimension_numbers = #tpu.dot_dimension_numbers<[1], [0], [0], [1], [0, 0, 1, 1], [], []>} : vector<8x4xf32>, vector<4x32xf32>, vector<8x32xf32> -> vector<8x32xf32>
    %32 = vector.broadcast %1 : vector<8x1xf32> to vector<8x32xf32>
    %33 = vector.broadcast %29 : vector<1x32xf32> to vector<8x32xf32>
    %34 = arith.mulf %32, %33 : vector<8x32xf32>
    %35 = arith.addf %31, %34 : vector<8x32xf32>
    %36 = vector.broadcast %30 : vector<1x32xf32> to vector<8x32xf32>
    %37 = arith.addf %35, %36 : vector<8x32xf32>
    %38 = arith.cmpf ogt, %37, %24 : vector<8x32xf32>
    %39 = arith.subf %37, %24 : vector<8x32xf32>
    %40 = arith.mulf %25, %39 : vector<8x32xf32>
    %41 = arith.addf %40, %24 : vector<8x32xf32>
    %42 = arith.select %38, %37, %41 : vector<8x32xi1>, vector<8x32xf32>
    %c0_16 = arith.constant 0 : index
    %c0_17 = arith.constant 0 : index
    %43 = vector.load %arg4[%c0_16, %c0_17] : memref<33x32xf32, #tpu.memory_space<vmem>>, vector<32x32xf32>
    %cst_18 = arith.constant dense<0.000000e+00> : vector<8x32xf32>
    %44 = tpu.matmul %42, %43, %cst_18 {dimension_numbers = #tpu.dot_dimension_numbers<[1], [0], [0], [1], [0, 0, 1, 1], [], []>} : vector<8x32xf32>, vector<32x32xf32>, vector<8x32xf32> -> vector<8x32xf32>
    %c32_19 = arith.constant 32 : index
    %c0_20 = arith.constant 0 : index
    %45 = vector.load %arg4[%c32_19, %c0_20] : memref<33x32xf32, #tpu.memory_space<vmem>>, vector<1x32xf32>
    %46 = vector.broadcast %45 : vector<1x32xf32> to vector<8x32xf32>
    %47 = arith.addf %44, %46 : vector<8x32xf32>
    %48 = arith.cmpf ogt, %47, %26 : vector<8x32xf32>
    %49 = arith.subf %47, %26 : vector<8x32xf32>
    %50 = arith.mulf %27, %49 : vector<8x32xf32>
    %51 = arith.addf %50, %26 : vector<8x32xf32>
    %52 = arith.select %48, %47, %51 : vector<8x32xi1>, vector<8x32xf32>
    %c0_21 = arith.constant 0 : index
    %c0_22 = arith.constant 0 : index
    %53 = vector.load %arg5[%c0_21, %c0_22] : memref<33x4xf32, #tpu.memory_space<vmem>>, vector<32x4xf32>
    %cst_23 = arith.constant dense<0.000000e+00> : vector<8x4xf32>
    %54 = tpu.matmul %52, %53, %cst_23 {dimension_numbers = #tpu.dot_dimension_numbers<[1], [0], [0], [1], [0, 0, 1, 1], [], []>} : vector<8x32xf32>, vector<32x4xf32>, vector<8x4xf32> -> vector<8x4xf32>
    %c32_24 = arith.constant 32 : index
    %c0_25 = arith.constant 0 : index
    %55 = vector.load %arg5[%c32_24, %c0_25] : memref<33x4xf32, #tpu.memory_space<vmem>>, vector<1x4xf32>
    %56 = vector.broadcast %55 : vector<1x4xf32> to vector<8x4xf32>
    %57 = arith.addf %54, %56 : vector<8x4xf32>
    %cst_26 = arith.constant 5.000000e-01 : f32
    %58 = vector.broadcast %cst_26 : f32 to vector<8x4xf32>
    %59 = arith.mulf %58, %57 : vector<8x4xf32>
    %60 = math.tanh %59 : vector<8x4xf32>
    %cst_27 = arith.constant 5.000000e-01 : f32
    %61 = vector.broadcast %cst_27 : f32 to vector<8x4xf32>
    %62 = arith.mulf %61, %60 : vector<8x4xf32>
    %cst_28 = arith.constant 5.000000e-01 : f32
    %63 = vector.broadcast %cst_28 : f32 to vector<8x4xf32>
    %64 = arith.addf %62, %63 : vector<8x4xf32>
    %c0_29 = arith.constant 0 : index
    %c0_30 = arith.constant 0 : index
    %65 = vector.load %arg7[%c0_29, %c0_30] : memref<8x4xf32, #tpu.memory_space<vmem>>, vector<8x4xf32>
    tpu.vector_store %arg7[%c0_29, %c0_30], %64 {strides = array<i32>} : memref<8x4xf32, #tpu.memory_space<vmem>>, vector<8x4xf32>,
    return
  }
  func.func @transform_0(%arg0: i32) -> (i32, i32) {
    %c0_i32 = arith.constant 0 : i32
    %c0_i32_0 = arith.constant 0 : i32
    return %arg0, %c0_i32 : i32, i32
  }
  func.func @transform_1(%arg0: i32) -> (i32, i32) {
    %c0_i32 = arith.constant 0 : i32
    %c0_i32_0 = arith.constant 0 : i32
    return %arg0, %c0_i32 : i32, i32
  }
  func.func @transform_2(%arg0: i32) -> (i32, i32) {
    %c0_i32 = arith.constant 0 : i32
    %c0_i32_0 = arith.constant 0 : i32
    %c0_i32_1 = arith.constant 0 : i32
    return %c0_i32, %c0_i32_0 : i32, i32
  }
  func.func @transform_3(%arg0: i32) -> (i32, i32) {
    %c0_i32 = arith.constant 0 : i32
    %c0_i32_0 = arith.constant 0 : i32
    %c0_i32_1 = arith.constant 0 : i32
    return %c0_i32, %c0_i32_0 : i32, i32
  }
  func.func @transform_4(%arg0: i32) -> (i32, i32) {
    %c0_i32 = arith.constant 0 : i32
    %c0_i32_0 = arith.constant 0 : i32
    %c0_i32_1 = arith.constant 0 : i32
    return %c0_i32, %c0_i32_0 : i32, i32
  }
  func.func @transform_5(%arg0: i32) -> (i32, i32) {
    %c0_i32 = arith.constant 0 : i32
    %c0_i32_0 = arith.constant 0 : i32
    %c0_i32_1 = arith.constant 0 : i32
    return %c0_i32, %c0_i32_0 : i32, i32
  }
  func.func @transform_6(%arg0: i32) -> (i32, i32) {
    %c0_i32 = arith.constant 0 : i32
    %c0_i32_0 = arith.constant 0 : i32
    return %arg0, %c0_i32 : i32, i32
  }
}

</mosaic_0001>

<llo_original>
// kernel: prediction_model_forward.1
$region0: #{prediction_model_forward.1}
  #allocation0 [shape = 'u32[]', space=smem, size = 0x4, offset = 0x4, fixed_abs, tag = 'smem constant byte address 0x4 - core index']
  #allocation1 [shape = 'u32[144,128]{1,0:T(1,128)}', space=vmem, size = 0x12000, scoped, tag = 'internal scratch']
  %s0 = inlined_call_operand.vmem [shape: f32[8,4], index: 0, kind: input, shape index: {}]
  %s1 = inlined_call_operand.vmem [shape: f32[8,1], index: 1, kind: input, shape index: {}]
  %s2 = inlined_call_operand.vmem [shape: f32[6,32], index: 2, kind: input, shape index: {}]
  %s3 = inlined_call_operand.vmem [shape: f32[33,32], index: 3, kind: input, shape index: {}]
  %s4 = inlined_call_operand.vmem [shape: f32[33,4], index: 4, kind: input, shape index: {}]
  %s5 = inlined_call_operand.vmem [shape: f32[104,128], index: 5, kind: input, shape index: {}]
  %s6 = inlined_call_operand.vmem [shape: f32[8,4], index: 6, kind: output, shape index: {}]
  %s7 = sld [smem:[#allocation0]]
  $region34: #{prediction_model_forward.1} parent=0
    _
  %s9 = ssub.s32 1, %s7
  %s10 = scalar_select 0, %s9, %s7
  // Predicated region
  $region2: #{prediction_model_forward.1} parent=0 // pred_check
    _
  $region3: #{prediction_model_forward.1} parent=0 // pred_check_branch
    %12 = sbr.rel (0) target = $region5
  $region4: #{prediction_model_forward.1} parent=0 // pred_region
    _
  $region5: #{prediction_model_forward.1} parent=0 // pred_fallthru
    _
  // Predicated region
  $region6: #{prediction_model_forward.1} parent=0 // pred_check
    _
  $region7: #{prediction_model_forward.1} parent=0 // pred_check_branch
    %14 = sbr.rel (0) target = $region9
  $region8: #{prediction_model_forward.1} parent=0 // pred_region
    _
  $region9: #{prediction_model_forward.1} parent=0 // pred_fallthru
    _
  // Predicated region
  $region10: #{prediction_model_forward.1} parent=0 // pred_check
    _
  $region11: #{prediction_model_forward.1} parent=0 // pred_check_branch
    %16 = sbr.rel (0) target = $region13
  $region12: #{prediction_model_forward.1} parent=0 // pred_region
    _
  $region13: #{prediction_model_forward.1} parent=0 // pred_fallthru
    _
  // Predicated region
  $region14: #{prediction_model_forward.1} parent=0 // pred_check
    _
  $region15: #{prediction_model_forward.1} parent=0 // pred_check_branch
    %18 = sbr.rel (0) target = $region17
  $region16: #{prediction_model_forward.1} parent=0 // pred_region
    _
  $region17: #{prediction_model_forward.1} parent=0 // pred_fallthru
    _
  // Predicated region
  $region18: #{prediction_model_forward.1} parent=0 // pred_check
    _
  $region19: #{prediction_model_forward.1} parent=0 // pred_check_branch
    %20 = sbr.rel (0) target = $region21
  $region20: #{prediction_model_forward.1} parent=0 // pred_region
    _
  $region21: #{prediction_model_forward.1} parent=0 // pred_fallthru
    _
  // Predicated region
  $region22: #{prediction_model_forward.1} parent=0 // pred_check
    _
  $region23: #{prediction_model_forward.1} parent=0 // pred_check_branch
    %22 = sbr.rel (0) target = $region25
  $region24: #{prediction_model_forward.1} parent=0 // pred_region
    _
  $region25: #{prediction_model_forward.1} parent=0 // pred_fallthru
    _
  %v23 = vld [vmem:[%s0] sm:$0xff]
  %v24 = vld [vmem:[%s1] sm:$0xff]
  %v25 = vld [vmem:[%s5] sm:$0x1]
  %v26 = vld [vmem:[%s5 + $0x1] sm:$0x1]
  %28 = vset.pattern.permute.xlu0 0
  %29 = vperm.xlu0 %28, %v24
  %v30 = vpop.permute.xlu0 %29
  %v32 = vlaneseq
  %v33 = vshrl.u32 %v32, 7
  %v34 = vsub.s32 0, %v33
  %v35 = vrot.slane %v25, %v34
  %v36 = vmul.f32 %v30, %v35
  %v37 = vlaneseq
  %v38 = vshrl.u32 %v37, 7
  %v39 = vsub.s32 0, %v38
  %v40 = vrot.slane %v26, %v39
  %v41 = vadd.f32 %v36, %v40
  %v42 = vlaneseq
  %v43 = vand.u32 %v42, 127
  %vm44 = vcmp.lt.s32.totalorder %v43, 4
  %v45 = vand.u32 2147483647, %v41
  %vm46 = vcmp.le.f32.partialorder %v45, 0.7853982
  %vm47 = vcmp.lt.s32.totalorder %v41, 0
  %v48 = vand.u32 %v41, 2139095040
  %v49 = vshrl.u32 %v48, 23
  %v50 = vsub.s32 %v49, 127
  %v51 = vand.u32 2147483647, %v41
  %v52 = vand.u32 %v51, 8388607
  %v53 = vor.u32 %v52, 8388608
  %v54 = vsub.s32 0, %v53
  %v55 = vadd.s32 %v50, 1
  %vm56 = vcmp.gt.s32.totalorder %v55, 0
  %v57 = vsel %vm56, %v55, 0
  %v58 = vshrl.u32 %v57, 5
  %v59 = vand.u32 %v57, 31
  %v60 = vsub.s32 32, %v59
  %v61 = vshrl.u32 683565275, %v60
  %v62 = vshll.u32 683565275, %v59
  %v63 = vshrl.u32 2475754826, %v60
  %v64 = vor.u32 %v62, %v63
  %v65 = vshll.u32 2475754826, %v59
  %v66 = vshrl.u32 2131351028, %v60
  %v67 = vor.u32 %v65, %v66
  %v68 = vshll.u32 2131351028, %v59
  %v69 = vshrl.u32 2102212464, %v60
  %v70 = vor.u32 %v68, %v69
  %v71 = vshll.u32 2102212464, %v59
  %v72 = vshrl.u32 920167782, %v60
  %v73 = vor.u32 %v71, %v72
  %v74 = vshll.u32 920167782, %v59
  %v75 = vshrl.u32 1326507024, %v60
  %v76 = vor.u32 %v74, %v75
  %vm77 = vcmp.lt.s32.totalorder %v58, 1
  %vm78 = vcmp.lt.s32.totalorder %v58, 2
  %vm79 = vcmp.lt.s32.totalorder %v58, 3
  %vm80 = vcmp.lt.s32.totalorder %v58, 4
  %v81 = vsel %vm77, %v61, %v64
  %v82 = vsel %vm80, %v70, 2102212464
  %v83 = vsel %vm79, %v67, %v82
  %v84 = vsel %vm78, %v81, %v83
  %v85 = vsel %vm77, %v64, %v67
  %v86 = vsel %vm80, %v73, 920167782
  %v87 = vsel %vm79, %v70, %v86
  %v88 = vsel %vm78, %v85, %v87
  %v89 = vsel %vm77, %v67, %v70
  %v90 = vsel %vm80, %v76, 1326507024
  %v91 = vsel %vm79, %v73, %v90
  %v92 = vsel %vm78, %v89, %v91
  %v93 = vshll.u32 %v53, 8
  %v94 = vmul.u32.u64.compose %v93, %v92
  %v95 = vextract.low.u32 %v94
  %v96 = vextract.high.u32 %v94
  %v97 = vmul.u32.u64.compose %v93, %v88
  %v98 = vextract.low.u32 %v97
  %v99 = vextract.high.u32 %v97
  %v100 = vmul.u32 %v93, %v84
  %v101 = vadd.s32 %v96, %v98
  %vm102 = vc.u32 %v96, %v98
  %v103 = vadd.s32 %v99, 1
  %v104 = vsel %vm102, %v103, %v99
  %v105 = vadd.s32 %v100, %v104
  %v106 = vadd.s32 %v105, 536870912
  %v107 = vshrl.u32 %v106, 30
  %v108 = vshll.u32 %v107, 30
  %v109 = vsub.s32 %v105, %v108
  %vm110 = vcmp.lt.s32.totalorder %v109, 0
  %v111 = vsub.s32 0, %v109
  %v112 = vsel %vm110, %v111, %v109
  %v113 = vclz %v112
  %v114 = vsub.s32 %v113, 2
  %vm115 = vcmp.gt.s32.totalorder 0, %v114
  %v116 = vsel %vm115, 0, %v114
  %v117 = vsub.s32 32, %v116
  %v118 = vshll.u32 %v109, %v116
  %v119 = vshrl.u32 %v101, %v117
  %v120 = vor.u32 %v118, %v119
  %v121 = vsub.s32 4294967266, %v116
  %v122 = vadd.s32 %v121, 127
  %v123 = vshll.u32 %v122, 23
  %v124 = vor.u32 4788187, %v123
  %v125 = vand.u32 2147483647, %v124
  %v127 = vcvt.s32.f32 %v120
  %v128 = vmul.f32 %v127, %v125
  %v129 = vxor.u32 %v128, 2147483648
  %v130 = vsel %vm47, %v129, %v128
  %v131 = vsub.s32 4, %v107
  %v132 = vsel %vm47, %v131, %v107
  %v133 = vsel %vm46, %v41, %v130
  %v134 = vsel %vm46, 0, %v132
  %v135 = vcosq.f32.pop %v133
  %v136 = vsinq.f32.pop %v133
  %vm137 = vweird.f32 %v41
  %v138 = vadd.s32 %v134, 3
  %v139 = vand.u32 %v138, 3
  %vm140 = vcmp.lt.s32.totalorder %v139, 2
  %vm141 = vcmp.eq.s32.totalorder %v139, 0
  %v142 = vxor.u32 %v136, 2147483648
  %v143 = vsel %vm141, %v135, %v142
  %vm144 = vcmp.eq.s32.totalorder %v139, 2
  %v145 = vxor.u32 %v135, 2147483648
  %v146 = vsel %vm144, %v145, %v136
  %v147 = vsel %vm140, %v143, %v146
  %v148 = vsel %vm137, nan, %v147
  %v149 = vsel %vm44, %v41, %v148
  %v150 = vld [vmem:[%s5 + $0x8] sm:$0xff]
  %v151 = vld [vmem:[%s5 + $0x10] sm:$0xff]
  %v152 = vld [vmem:[%s5 + $0x18] sm:$0x1]
  %v153 = vld [vmem:[%s5 + $0x20] sm:$0xff]
  %v154 = vld [vmem:[%s5 + $0x28] sm:$0xff]
  %v155 = vld [vmem:[%s5 + $0x30] sm:$0xff]
  %v156 = vld [vmem:[%s5 + $0x38] sm:$0xff]
  %v157 = vld [vmem:[%s5 + $0x40] sm:$0xff]
  %v158 = vld [vmem:[%s5 + $0x48] sm:$0xff]
  %v159 = vld [vmem:[%s5 + $0x50] sm:$0xff]
  %v160 = vld [vmem:[%s5 + $0x58] sm:$0xff]
  %v161 = vld [vmem:[%s5 + $0x60] sm:$0x1]
  %v162 = vlaneseq
  %v163 = vshrl.u32 %v162, 7
  %v164 = vsub.s32 0, %v163
  %v165 = vrot.slane %v152, %v164
  %vm166 = vcmask 130048
  %v168 = vsel %vm166, %v149, 0
  %170 = vmatprep.subr.mxu0 0.0
  %171 = vmatpush1.msra.mxu0 0.0
  %172 = vmatprep.subr.mxu0 0.0
  %173 = vmatpush1.msra.mxu0 0.0
  %174 = vmatprep.subr.mxu0 0.0
  %175 = vmatpush1.msra.mxu0 0.0
  %176 = vmatprep.subr.mxu0 0.0
  %177 = vmatpush1.msra.mxu0 0.0
  %178 = vmatprep.subr.mxu0 0.0
  %179 = vmatpush1.msra.mxu0 0.0
  %180 = vmatprep.subr.mxu0 0.0
  %181 = vmatpush1.msra.mxu0 0.0
  %182 = vmatprep.subr.mxu0 0.0
  %183 = vmatpush1.msra.mxu0 0.0
  %184 = vmatprep.subr.mxu0 0.0
  %185 = vmatpush1.msra.mxu0 0.0
  %186 = vmatprep.subr.mxu0 0.0
  %187 = vmatpush1.msra.mxu0 0.0
  %188 = vmatprep.subr.mxu0 0.0
  %189 = vmatpush1.msra.mxu0 0.0
  %190 = vmatprep.subr.mxu0 0.0
  %191 = vmatpush1.msra.mxu0 0.0
  %192 = vmatprep.subr.mxu0 0.0
  %193 = vmatpush1.msra.mxu0 0.0
  %194 = vmatprep.subr.mxu0 0.0
  %195 = vmatpush1.msra.mxu0 0.0
  %196 = vmatprep.subr.mxu0 0.0
  %197 = vmatpush1.msra.mxu0 0.0
  %198 = vmatprep.subr.mxu0 0.0
  %199 = vmatpush1.msra.mxu0 %v151
  %200 = vmatprep.subr.mxu0 0.0
  %201 = vmatpush1.msra.mxu0 %v150
  %202 = vmatprep.subr.mxu0 0.0
  %203 = vmatpush2.msra.mxu0 0.0
  %204 = vmatprep.subr.mxu0 0.0
  %205 = vmatpush2.msra.mxu0 0.0
  %206 = vmatprep.subr.mxu0 0.0
  %207 = vmatpush2.msra.mxu0 0.0
  %208 = vmatprep.subr.mxu0 0.0
  %209 = vmatpush2.msra.mxu0 0.0
  %210 = vmatprep.subr.mxu0 0.0
  %211 = vmatpush2.msra.mxu0 0.0
  %212 = vmatprep.subr.mxu0 0.0
  %213 = vmatpush2.msra.mxu0 0.0
  %214 = vmatprep.subr.mxu0 0.0
  %215 = vmatpush2.msra.mxu0 0.0
  %216 = vmatprep.subr.mxu0 0.0
  %217 = vmatpush2.msra.mxu0 0.0
  %218 = vmatprep.subr.mxu0 0.0
  %219 = vmatpush2.msra.mxu0 0.0
  %220 = vmatprep.subr.mxu0 0.0
  %221 = vmatpush2.msra.mxu0 0.0
  %222 = vmatprep.subr.mxu0 0.0
  %223 = vmatpush2.msra.mxu0 0.0
  %224 = vmatprep.subr.mxu0 0.0
  %225 = vmatpush2.msra.mxu0 0.0
  %226 = vmatprep.subr.mxu0 0.0
  %227 = vmatpush2.msra.mxu0 0.0
  %228 = vmatprep.subr.mxu0 0.0
  %229 = vmatpush2.msra.mxu0 0.0
  %230 = vmatprep.subr.mxu0 0.0
  %231 = vmatpush2.msra.mxu0 0.0
  %232 = vmatprep.subr.mxu0 0.0
  %233 = vmatpush2.msra.mxu0 0.0
  %234 = vmatprep.mubr.f32.mxu0 0.0
  %235 = vmatmul.mubr.f32.gmra.mxu0 %v168
  %v236 = vpop.f32.mrf.mxu0
  %v237 = vadd.f32 %v165, %v236
  %v238 = vpop.f32.mrf.mxu0
  %239 = vdwg.mxu0
  %v240 = vlaneseq
  %v241 = vshrl.u32 %v240, 7
  %v242 = vsub.s32 0, %v241
  %v243 = vrot.slane %v161, %v242
  %vm244 = vcmask 523264
  %v246 = vsel %vm244, %v237, 0
  %248 = vmatprep.subr.mxu0 0.0
  %249 = vmatpush1.msra.mxu0 0.0
  %250 = vmatprep.subr.mxu0 0.0
  %251 = vmatpush1.msra.mxu0 0.0
  %252 = vmatprep.subr.mxu0 0.0
  %253 = vmatpush1.msra.mxu0 0.0
  %254 = vmatprep.subr.mxu0 0.0
  %255 = vmatpush1.msra.mxu0 0.0
  %256 = vmatprep.subr.mxu0 0.0
  %257 = vmatpush1.msra.mxu0 0.0
  %258 = vmatprep.subr.mxu0 0.0
  %259 = vmatpush1.msra.mxu0 0.0
  %260 = vmatprep.subr.mxu0 0.0
  %261 = vmatpush1.msra.mxu0 0.0
  %262 = vmatprep.subr.mxu0 0.0
  %263 = vmatpush1.msra.mxu0 0.0
  %264 = vmatprep.subr.mxu0 0.0
  %265 = vmatpush1.msra.mxu0 %v160
  %266 = vmatprep.subr.mxu0 0.0
  %267 = vmatpush1.msra.mxu0 %v159
  %268 = vmatprep.subr.mxu0 0.0
  %269 = vmatpush1.msra.mxu0 %v158
  %270 = vmatprep.subr.mxu0 0.0
  %271 = vmatpush1.msra.mxu0 %v157
  %272 = vmatprep.subr.mxu0 0.0
  %273 = vmatpush1.msra.mxu0 %v156
  %274 = vmatprep.subr.mxu0 0.0
  %275 = vmatpush1.msra.mxu0 %v155
  %276 = vmatprep.subr.mxu0 0.0
  %277 = vmatpush1.msra.mxu0 %v154
  %278 = vmatprep.subr.mxu0 0.0
  %279 = vmatpush1.msra.mxu0 %v153
  %280 = vmatprep.subr.mxu0 0.0
  %281 = vmatpush2.msra.mxu0 0.0
  %282 = vmatprep.subr.mxu0 0.0
  %283 = vmatpush2.msra.mxu0 0.0
  %284 = vmatprep.subr.mxu0 0.0
  %285 = vmatpush2.msra.mxu0 0.0
  %286 = vmatprep.subr.mxu0 0.0
  %287 = vmatpush2.msra.mxu0 0.0
  %288 = vmatprep.subr.mxu0 0.0
  %289 = vmatpush2.msra.mxu0 0.0
  %290 = vmatprep.subr.mxu0 0.0
  %291 = vmatpush2.msra.mxu0 0.0
  %292 = vmatprep.subr.mxu0 0.0
  %293 = vmatpush2.msra.mxu0 0.0
  %294 = vmatprep.subr.mxu0 0.0
  %295 = vmatpush2.msra.mxu0 0.0
  %296 = vmatprep.subr.mxu0 0.0
  %297 = vmatpush2.msra.mxu0 0.0
  %298 = vmatprep.subr.mxu0 0.0
  %299 = vmatpush2.msra.mxu0 0.0
  %300 = vmatprep.subr.mxu0 0.0
  %301 = vmatpush2.msra.mxu0 0.0
  %302 = vmatprep.subr.mxu0 0.0
  %303 = vmatpush2.msra.mxu0 0.0
  %304 = vmatprep.subr.mxu0 0.0
  %305 = vmatpush2.msra.mxu0 0.0
  %306 = vmatprep.subr.mxu0 0.0
  %307 = vmatpush2.msra.mxu0 0.0
  %308 = vmatprep.subr.mxu0 0.0
  %309 = vmatpush2.msra.mxu0 0.0
  %310 = vmatprep.subr.mxu0 0.0
  %311 = vmatpush2.msra.mxu0 0.0
  %312 = vmatprep.mubr.f32.mxu0 0.0
  %313 = vmatmul.mubr.f32.gmra.mxu0 %v246
  %v314 = vpop.f32.mrf.mxu0
  %v315 = vadd.f32 %v243, %v314
  %v316 = vpop.f32.mrf.mxu0
  %317 = vdwg.mxu0
  %v318 = vld [vmem:[%s2] sm:$0xf]
  %v319 = vld [vmem:[%s2 + $0x4] sm:$0x1]
  %v320 = vld [vmem:[%s2 + $0x5] sm:$0x1]
  %v321 = vlaneseq
  %v322 = vshrl.u32 %v321, 7
  %v323 = vsub.s32 0, %v322
  %v324 = vrot.slane %v319, %v323
  %v325 = vmul.f32 %v30, %v324
  %vm326 = vcmask 31744
  %v328 = vsel %vm326, %v23, 0
  %vm330 = vcmask 1043456
  %v332 = vsel %vm330, %v318, 0
  %334 = vmatprep.subr.mxu0 0.0
  %335 = vmatpush1.msra.mxu0 0.0
  %336 = vmatprep.subr.mxu0 0.0
  %337 = vmatpush1.msra.mxu0 0.0
  %338 = vmatprep.subr.mxu0 0.0
  %339 = vmatpush1.msra.mxu0 0.0
  %340 = vmatprep.subr.mxu0 0.0
  %341 = vmatpush1.msra.mxu0 0.0
  %342 = vmatprep.subr.mxu0 0.0
  %343 = vmatpush1.msra.mxu0 0.0
  %344 = vmatprep.subr.mxu0 0.0
  %345 = vmatpush1.msra.mxu0 0.0
  %346 = vmatprep.subr.mxu0 0.0
  %347 = vmatpush1.msra.mxu0 0.0
  %348 = vmatprep.subr.mxu0 0.0
  %349 = vmatpush1.msra.mxu0 0.0
  %350 = vmatprep.subr.mxu0 0.0
  %351 = vmatpush1.msra.mxu0 0.0
  %352 = vmatprep.subr.mxu0 0.0
  %353 = vmatpush1.msra.mxu0 0.0
  %354 = vmatprep.subr.mxu0 0.0
  %355 = vmatpush1.msra.mxu0 0.0
  %356 = vmatprep.subr.mxu0 0.0
  %357 = vmatpush1.msra.mxu0 0.0
  %358 = vmatprep.subr.mxu0 0.0
  %359 = vmatpush1.msra.mxu0 0.0
  %360 = vmatprep.subr.mxu0 0.0
  %361 = vmatpush1.msra.mxu0 0.0
  %362 = vmatprep.subr.mxu0 0.0
  %363 = vmatpush1.msra.mxu0 0.0
  %364 = vmatprep.subr.mxu0 0.0
  %365 = vmatpush1.msra.mxu0 %v332
  %366 = vmatprep.subr.mxu0 0.0
  %367 = vmatpush2.msra.mxu0 0.0
  %368 = vmatprep.subr.mxu0 0.0
  %369 = vmatpush2.msra.mxu0 0.0
  %370 = vmatprep.subr.mxu0 0.0
  %371 = vmatpush2.msra.mxu0 0.0
  %372 = vmatprep.subr.mxu0 0.0
  %373 = vmatpush2.msra.mxu0 0.0
  %374 = vmatprep.subr.mxu0 0.0
  %375 = vmatpush2.msra.mxu0 0.0
  %376 = vmatprep.subr.mxu0 0.0
  %377 = vmatpush2.msra.mxu0 0.0
  %378 = vmatprep.subr.mxu0 0.0
  %379 = vmatpush2.msra.mxu0 0.0
  %380 = vmatprep.subr.mxu0 0.0
  %381 = vmatpush2.msra.mxu0 0.0
  %382 = vmatprep.subr.mxu0 0.0
  %383 = vmatpush2.msra.mxu0 0.0
  %384 = vmatprep.subr.mxu0 0.0
  %385 = vmatpush2.msra.mxu0 0.0
  %386 = vmatprep.subr.mxu0 0.0
  %387 = vmatpush2.msra.mxu0 0.0
  %388 = vmatprep.subr.mxu0 0.0
  %389 = vmatpush2.msra.mxu0 0.0
  %390 = vmatprep.subr.mxu0 0.0
  %391 = vmatpush2.msra.mxu0 0.0
  %392 = vmatprep.subr.mxu0 0.0
  %393 = vmatpush2.msra.mxu0 0.0
  %394 = vmatprep.subr.mxu0 0.0
  %395 = vmatpush2.msra.mxu0 0.0
  %396 = vmatprep.subr.mxu0 0.0
  %397 = vmatpush2.msra.mxu0 0.0
  %398 = vmatprep.mubr.f32.mxu0 0.0
  %399 = vmatmul.mubr.f32.gmra.mxu0 %v328
  %v400 = vpop.f32.mrf.mxu0
  %v401 = vadd.f32 %v325, %v400
  %v402 = vpop.f32.mrf.mxu0
  %403 = vdwg.mxu0
  %v404 = vlaneseq
  %v405 = vshrl.u32 %v404, 7
  %v406 = vsub.s32 0, %v405
  %v407 = vrot.slane %v320, %v406
  %v408 = vadd.f32 %v401, %v407
  %vm409 = vcmp.gt.f32.partialorder %v408, %v315
  %v410 = vsub.f32 %v408, %v315
  %412 = vrot.lane.b32.xlu0 %v410, 32
  %v413 = vpop.permute.xlu0 %412
  %v415 = vmul.f32 %v315, %v413
  %417 = vrot.lane.b32.xlu0 %v315, 32
  %v418 = vpop.permute.xlu0 %417
  %v420 = vadd.f32 %v415, %v418
  %422 = vrot.lane.b32.xlu0 %v420, 96
  %v423 = vpop.permute.xlu0 %422
  %v425 = vsel %vm409, %v408, %v423
  %v426 = vld [vmem:[%s3] sm:$0xff]
  %v427 = vld [vmem:[%s3 + $0x8] sm:$0xff]
  %v428 = vld [vmem:[%s3 + $0x10] sm:$0xff]
  %v429 = vld [vmem:[%s3 + $0x18] sm:$0xff]
  %v430 = vld [vmem:[%s3 + $0x20] sm:$0x1]
  %v431 = vlaneseq
  %v432 = vshrl.u32 %v431, 7
  %v433 = vsub.s32 0, %v432
  %v434 = vrot.slane %v430, %v433
  %vm435 = vcmask 261120
  %v437 = vsel %vm435, %v425, 0
  %439 = vmatprep.subr.mxu0 0.0
  %440 = vmatpush1.msra.mxu0 0.0
  %441 = vmatprep.subr.mxu0 0.0
  %442 = vmatpush1.msra.mxu0 0.0
  %443 = vmatprep.subr.mxu0 0.0
  %444 = vmatpush1.msra.mxu0 0.0
  %445 = vmatprep.subr.mxu0 0.0
  %446 = vmatpush1.msra.mxu0 0.0
  %447 = vmatprep.subr.mxu0 0.0
  %448 = vmatpush1.msra.mxu0 0.0
  %449 = vmatprep.subr.mxu0 0.0
  %450 = vmatpush1.msra.mxu0 0.0
  %451 = vmatprep.subr.mxu0 0.0
  %452 = vmatpush1.msra.mxu0 0.0
  %453 = vmatprep.subr.mxu0 0.0
  %454 = vmatpush1.msra.mxu0 0.0
  %455 = vmatprep.subr.mxu0 0.0
  %456 = vmatpush1.msra.mxu0 0.0
  %457 = vmatprep.subr.mxu0 0.0
  %458 = vmatpush1.msra.mxu0 0.0
  %459 = vmatprep.subr.mxu0 0.0
  %460 = vmatpush1.msra.mxu0 0.0
  %461 = vmatprep.subr.mxu0 0.0
  %462 = vmatpush1.msra.mxu0 0.0
  %463 = vmatprep.subr.mxu0 0.0
  %464 = vmatpush1.msra.mxu0 %v429
  %465 = vmatprep.subr.mxu0 0.0
  %466 = vmatpush1.msra.mxu0 %v428
  %467 = vmatprep.subr.mxu0 0.0
  %468 = vmatpush1.msra.mxu0 %v427
  %469 = vmatprep.subr.mxu0 0.0
  %470 = vmatpush1.msra.mxu0 %v426
  %471 = vmatprep.subr.mxu0 0.0
  %472 = vmatpush2.msra.mxu0 0.0
  %473 = vmatprep.subr.mxu0 0.0
  %474 = vmatpush2.msra.mxu0 0.0
  %475 = vmatprep.subr.mxu0 0.0
  %476 = vmatpush2.msra.mxu0 0.0
  %477 = vmatprep.subr.mxu0 0.0
  %478 = vmatpush2.msra.mxu0 0.0
  %479 = vmatprep.subr.mxu0 0.0
  %480 = vmatpush2.msra.mxu0 0.0
  %481 = vmatprep.subr.mxu0 0.0
  %482 = vmatpush2.msra.mxu0 0.0
  %483 = vmatprep.subr.mxu0 0.0
  %484 = vmatpush2.msra.mxu0 0.0
  %485 = vmatprep.subr.mxu0 0.0
  %486 = vmatpush2.msra.mxu0 0.0
  %487 = vmatprep.subr.mxu0 0.0
  %488 = vmatpush2.msra.mxu0 0.0
  %489 = vmatprep.subr.mxu0 0.0
  %490 = vmatpush2.msra.mxu0 0.0
  %491 = vmatprep.subr.mxu0 0.0
  %492 = vmatpush2.msra.mxu0 0.0
  %493 = vmatprep.subr.mxu0 0.0
  %494 = vmatpush2.msra.mxu0 0.0
  %495 = vmatprep.subr.mxu0 0.0
  %496 = vmatpush2.msra.mxu0 0.0
  %497 = vmatprep.subr.mxu0 0.0
  %498 = vmatpush2.msra.mxu0 0.0
  %499 = vmatprep.subr.mxu0 0.0
  %500 = vmatpush2.msra.mxu0 0.0
  %501 = vmatprep.subr.mxu0 0.0
  %502 = vmatpush2.msra.mxu0 0.0
  %503 = vmatprep.mubr.f32.mxu0 0.0
  %504 = vmatmul.mubr.f32.gmra.mxu0 %v437
  %v505 = vpop.f32.mrf.mxu0
  %v506 = vadd.f32 %v434, %v505
  %v507 = vpop.f32.mrf.mxu0
  %508 = vdwg.mxu0
  %509 = vrot.lane.b32.xlu0 %v315, 64
  %v510 = vpop.permute.xlu0 %509
  %vm512 = vcmp.gt.f32.partialorder %v506, %v510
  %v513 = vsub.f32 %v506, %v510
  %515 = vrot.lane.b32.xlu0 %v513, 96
  %v516 = vpop.permute.xlu0 %515
  %v518 = vmul.f32 %v315, %v516
  %v519 = vadd.f32 %v518, %v418
  %521 = vrot.lane.b32.xlu0 %v519, 32
  %v522 = vpop.permute.xlu0 %521
  %v524 = vsel %vm512, %v506, %v522
  %v525 = vld [vmem:[%s4] sm:$0xff]
  %v526 = vld [vmem:[%s4 + $0x8] sm:$0xff]
  %v527 = vld [vmem:[%s4 + $0x10] sm:$0xff]
  %v528 = vld [vmem:[%s4 + $0x18] sm:$0xff]
  %v529 = vld [vmem:[%s4 + $0x20] sm:$0x1]
  %v530 = vlaneseq
  %v531 = vshrl.u32 %v530, 7
  %v532 = vsub.s32 0, %v531
  %v533 = vrot.slane %v529, %v532
  %v535 = vsel %vm435, %v524, 0
  %537 = vmatprep.subr.mxu0 0.0
  %538 = vmatpush1.msra.mxu0 0.0
  %539 = vmatprep.subr.mxu0 0.0
  %540 = vmatpush1.msra.mxu0 0.0
  %541 = vmatprep.subr.mxu0 0.0
  %542 = vmatpush1.msra.mxu0 0.0
  %543 = vmatprep.subr.mxu0 0.0
  %544 = vmatpush1.msra.mxu0 0.0
  %545 = vmatprep.subr.mxu0 0.0
  %546 = vmatpush1.msra.mxu0 0.0
  %547 = vmatprep.subr.mxu0 0.0
  %548 = vmatpush1.msra.mxu0 0.0
  %549 = vmatprep.subr.mxu0 0.0
  %550 = vmatpush1.msra.mxu0 0.0
  %551 = vmatprep.subr.mxu0 0.0
  %552 = vmatpush1.msra.mxu0 0.0
  %553 = vmatprep.subr.mxu0 0.0
  %554 = vmatpush1.msra.mxu0 0.0
  %555 = vmatprep.subr.mxu0 0.0
  %556 = vmatpush1.msra.mxu0 0.0
  %557 = vmatprep.subr.mxu0 0.0
  %558 = vmatpush1.msra.mxu0 0.0
  %559 = vmatprep.subr.mxu0 0.0
  %560 = vmatpush1.msra.mxu0 0.0
  %561 = vmatprep.subr.mxu0 0.0
  %562 = vmatpush1.msra.mxu0 %v528
  %563 = vmatprep.subr.mxu0 0.0
  %564 = vmatpush1.msra.mxu0 %v527
  %565 = vmatprep.subr.mxu0 0.0
  %566 = vmatpush1.msra.mxu0 %v526
  %567 = vmatprep.subr.mxu0 0.0
  %568 = vmatpush1.msra.mxu0 %v525
  %569 = vmatprep.subr.mxu0 0.0
  %570 = vmatpush2.msra.mxu0 0.0
  %571 = vmatprep.subr.mxu0 0.0
  %572 = vmatpush2.msra.mxu0 0.0
  %573 = vmatprep.subr.mxu0 0.0
  %574 = vmatpush2.msra.mxu0 0.0
  %575 = vmatprep.subr.mxu0 0.0
  %576 = vmatpush2.msra.mxu0 0.0
  %577 = vmatprep.subr.mxu0 0.0
  %578 = vmatpush2.msra.mxu0 0.0
  %579 = vmatprep.subr.mxu0 0.0
  %580 = vmatpush2.msra.mxu0 0.0
  %581 = vmatprep.subr.mxu0 0.0
  %582 = vmatpush2.msra.mxu0 0.0
  %583 = vmatprep.subr.mxu0 0.0
  %584 = vmatpush2.msra.mxu0 0.0
  %585 = vmatprep.subr.mxu0 0.0
  %586 = vmatpush2.msra.mxu0 0.0
  %587 = vmatprep.subr.mxu0 0.0
  %588 = vmatpush2.msra.mxu0 0.0
  %589 = vmatprep.subr.mxu0 0.0
  %590 = vmatpush2.msra.mxu0 0.0
  %591 = vmatprep.subr.mxu0 0.0
  %592 = vmatpush2.msra.mxu0 0.0
  %593 = vmatprep.subr.mxu0 0.0
  %594 = vmatpush2.msra.mxu0 0.0
  %595 = vmatprep.subr.mxu0 0.0
  %596 = vmatpush2.msra.mxu0 0.0
  %597 = vmatprep.subr.mxu0 0.0
  %598 = vmatpush2.msra.mxu0 0.0
  %599 = vmatprep.subr.mxu0 0.0
  %600 = vmatpush2.msra.mxu0 0.0
  %601 = vmatprep.mubr.f32.mxu0 0.0
  %602 = vmatmul.mubr.f32.gmra.mxu0 %v535
  %v603 = vpop.f32.mrf.mxu0
  %v604 = vadd.f32 %v533, %v603
  %v605 = vpop.f32.mrf.mxu0
  %606 = vdwg.mxu0
  %v607 = vmul.f32 %v604, 0.5
  %v608 = vtanh.pop %v607
  %v609 = vmul.f32 %v608, 0.5
  %v610 = vadd.f32 %v609, 0.5
  %611 = vst.msk [vmem:[%s6] sm:$0xff] %vm326, %v610
  // Predicated region
  $region26: #{prediction_model_forward.1} parent=0 // pred_check
    _
  $region27: #{prediction_model_forward.1} parent=0 // pred_check_branch
    %613 = sbr.rel (0) target = $region29
  $region28: #{prediction_model_forward.1} parent=0 // pred_region
    _
  $region29: #{prediction_model_forward.1} parent=0 // pred_fallthru
    _
  // Predicated region
  $region30: #{prediction_model_forward.1} parent=0 // pred_check
    _
  $region31: #{prediction_model_forward.1} parent=0 // pred_check_branch
    %615 = sbr.rel (0) target = $region33
  $region32: #{prediction_model_forward.1} parent=0 // pred_region
    _
  $region33: #{prediction_model_forward.1} parent=0 // pred_fallthru
    _

</llo_original>
